<compile_context>
chip_gen: v5e
topology: v5e:2x2
jax: 0.10.0
libtpu: 0.0.40
codegen_flags: <defaults>
</compile_context>

<pallas_src>
import functools

import jax
import jax.numpy as jnp
from jax.experimental import pallas as pl
from jax.experimental.pallas import tpu as pltpu


# ----------------------------- Pallas kernel --------------------------------


def _mynet_kernel(x_ref, m1_ref, m3_ref,
                  w1_ref, t1_ref, w2_ref, t2_ref,
                  w3_ref, t3_ref, w4_ref, t4_ref,
                  out_ref, *, W, Lh, Lo):
    """One batch slab per grid step (channel-major, batch folded into lanes).

    Per-sample spatial grid = (H+8) rows of W lanes: rows [4, H+4) hold the
    input, rows [0,4) and [H+4, H+8) are zeros.  All samples of the slab are
    concatenated along lanes with that fixed stride, so a lane shift of k*W
    is "shift by k image rows" for every sample simultaneously.

    x_ref  : (1, Cin_pad, Lx) f32, Lx >= Lh + 4*W (zero overhang at the end).
    m1_ref : (1, Lh) f32  -- 1.0 on rows where conv1 output is valid.
    m3_ref : (1, Lo) f32  -- 1.0 on rows where conv3 output is valid.
    wN/tN  : f32 weights with BN scale folded in / per-channel shifts (C,1).
    out_ref: (1, C2, Lo) f32 -- rows [0, H) of each sample's grid are the
             final NCHW output rows; rows >= H are junk, dropped by wrapper.
    """
    x = x_ref[0]                                    # (Cin_pad, Lx)

    # ---- Conv1 (5,1) VALID + BN1 + ReLU + ConstantPad (via mask) -----------
    # Merged-tap im2col: 5 lane-shifted slices stacked on the (8-row aligned)
    # sublane axis -> a single K = 5*Cin_pad matmul over Lh lanes.
    xi1 = jnp.concatenate([x[:, k * W:k * W + Lh] for k in range(5)], axis=0)
    a1 = jnp.dot(w1_ref[...], xi1, preferred_element_type=jnp.float32)
    h1 = jnp.maximum(a1 + t1_ref[...], 0.0) * m1_ref[...]      # (C1, Lh)

    # ---- Conv2 1x1 + BN2 + ReLU (pointwise over the whole grid) ------------
    # Rows outside the true padded grid become relu(t2); they are only ever
    # read through rows that conv3's output mask discards, so this is safe.
    h2 = jnp.maximum(
        jnp.dot(w2_ref[...], h1, preferred_element_type=jnp.float32)
        + t2_ref[...], 0.0)                                     # (C2, Lh)

    # ---- Conv3 (5,1) VALID + BN3 + ReLU + ConstantPad (via mask) -----------
    xi3 = jnp.concatenate([h2[:, k * W:k * W + Lo] for k in range(5)], axis=0)
    a3 = jnp.dot(w3_ref[...], xi3, preferred_element_type=jnp.float32)
    h3 = jnp.maximum(a3 + t3_ref[...], 0.0) * m3_ref[...]       # (C1, Lo)

    # ---- Conv4 1x1 + BN4 (no ReLU); masked-zero rows come out as t4 --------
    out = jnp.dot(w4_ref[...], h3, preferred_element_type=jnp.float32) \
        + t4_ref[...]
    out_ref[0] = out.astype(out_ref.dtype)                      # (C2, Lo)


# --------------------------------- wrapper ----------------------------------


@jax.jit
def mynet_forward(x_nchw, folded_params):
    """x_nchw: (N, Cin, H, W) float32 -> (N, C2, H, W) float32."""
    w1, t1, w2, t2, w3, t3, w4, t4 = folded_params
    N, Cin, H, W = x_nchw.shape
    assert H >= 5, "the (5,1) VALID conv + (2,2) pad scheme needs H >= 5"
    C2 = w2.shape[0]
    cin_pad = w1.shape[1] // 5

    s_rows = H + 8                    # per-sample grid rows (4 zero rows top/bot)
    S = s_rows * W                    # per-sample lane stride

    # ---- batch tiling -------------------------------------------------------
    # Fold samples into the lane (matmul free) dim to amortize per-step
    # overhead and fill the MXU pipe; keep >= 2 "parallel" grid steps when
    # N >= 2 so both v7x TensorCores get work (harmless on 1-TC v5e/v6e).
    # B_MAX keeps the per-step slab comfortably inside v7x's scoped VMEM.
    B_MAX = 32
    num_steps = max(min(N, 2), -(-N // B_MAX))
    B_step = -(-N // num_steps)
    N_pad = num_steps * B_step

    L = B_step * S                    # output / conv3 lane extent per step
    OV = -(-4 * W // 128) * 128       # 128-aligned im2col overhang (>= 4*W)
    Lh = L + OV                       # conv1/conv2 grid lane extent
    Lx = L + 2 * OV                   # input slab lane extent

    # ---- input slab: channel-major, batch folded into lanes ----------------
    xp = jnp.pad(x_nchw.astype(jnp.float32),
                 ((0, N_pad - N), (0, cin_pad - Cin), (4, 4), (0, 0)))
    xp = xp.reshape(num_steps, B_step, cin_pad, S)
    xp = xp.transpose(0, 2, 1, 3).reshape(num_steps, cin_pad, L)
    xp = jnp.pad(xp, ((0, 0), (0, 0), (0, Lx - L)))             # zero overhang

    # ---- precomputed pad/validity lane masks (replace per-step iota work) --
    row = jnp.arange(s_rows)
    m1_row = ((row >= 4) & (row < H)).astype(jnp.float32)       # conv1-valid rows
    m3_row = ((row >= 2) & (row < H - 2)).astype(jnp.float32)   # conv3-valid rows

    def lane_mask(row_mask, length):
        m = jnp.tile(jnp.repeat(row_mask, W), B_step)           # (L,)
        return jnp.pad(m, (0, length - L))[None, :]             # (1, length)

    m1 = lane_mask(m1_row, Lh)
    m3 = lane_mask(m3_row, L)

    kernel = functools.partial(_mynet_kernel, W=W, Lh=Lh, Lo=L)

    def full(a):
        return pl.BlockSpec(a.shape, lambda *_: (0,) * a.ndim)

    out = pl.pallas_call(
        kernel,
        out_shape=jax.ShapeDtypeStruct((num_steps, C2, L), jnp.float32),
        grid_spec=pltpu.PrefetchScalarGridSpec(
            num_scalar_prefetch=0,
            grid=(num_steps,),
            in_specs=[pl.BlockSpec((1, cin_pad, Lx), lambda g: (g, 0, 0)),
                      full(m1), full(m3),
                      full(w1), full(t1), full(w2), full(t2),
                      full(w3), full(t3), full(w4), full(t4)],
            out_specs=pl.BlockSpec((1, C2, L), lambda g: (g, 0, 0)),
        ),
        compiler_params=pltpu.CompilerParams(
            dimension_semantics=("parallel",)),
    )(xp, m1, m3, w1, t1, w2, t2, w3, t3, w4, t4)

    # (steps, C2, B_step*S): rows [0, H) of each sample's grid are the output.
    out = out.reshape(num_steps, C2, B_step, s_rows, W)[:, :, :, :H, :]
    out = out.transpose(0, 2, 1, 3, 4).reshape(N_pad, C2, H, W)
    return out[:N]


# --------------------- deterministic parameter construction -----------------


def make_raw_params(key, inp_dim, mod_dim1, mod_dim2):
    """PyTorch-layout params (conv OIHW weights + biases, BN stats)."""
    ks = jax.random.split(key, 12)

    def conv(kw, kb, co, ci, kh):
        w = 0.1 * jax.random.normal(kw, (co, ci, kh, 1), jnp.float32)
        b = 0.1 * jax.random.normal(kb, (co,), jnp.float32)
        return w, b

    def bn(k, c):
        k1, k2, k3, k4 = jax.random.split(k, 4)
        gamma = 1.0 + 0.1 * jax.random.normal(k1, (c,), jnp.float32)
        beta = 0.1 * jax.random.normal(k2, (c,), jnp.float32)
        mean = 0.1 * jax.random.normal(k3, (c,), jnp.float32)
        var = jnp.abs(jax.random.normal(k4, (c,), jnp.float32)) + 0.5
        return gamma, beta, mean, var

    p = {}
    p["conv1"] = conv(ks[0], ks[1], mod_dim1, inp_dim, 5)
    p["bn1"] = bn(ks[2], mod_dim1)
    p["conv2"] = conv(ks[3], ks[4], mod_dim2, mod_dim1, 1)
    p["bn2"] = bn(ks[5], mod_dim2)
    p["conv3"] = conv(ks[6], ks[7], mod_dim1, mod_dim2, 5)
    p["bn3"] = bn(ks[8], mod_dim1)
    p["conv4"] = conv(ks[9], ks[10], mod_dim2, mod_dim1, 1)
    p["bn4"] = bn(ks[11], mod_dim2)
    return p


def fold_params(raw, eps=1e-5):
    """Fold BN (running stats) + conv bias into the weights / per-channel
    shifts and reshape to merged-tap channel-major layout.  Weights stay f32
    (per review: f32 MXU operands are essentially free at this size and keep
    parity with the f32 PyTorch model)."""

    def scale_shift(conv_p, bn_p):
        _, b = conv_p
        gamma, beta, mean, var = bn_p
        scale = gamma / jnp.sqrt(var + eps)
        shift = beta - mean * scale + scale * b
        return scale, shift

    w1, _ = raw["conv1"]
    w2, _ = raw["conv2"]
    w3, _ = raw["conv3"]
    w4, _ = raw["conv4"]
    s1, t1 = scale_shift(raw["conv1"], raw["bn1"])
    s2, t2 = scale_shift(raw["conv2"], raw["bn2"])
    s3, t3 = scale_shift(raw["conv3"], raw["bn3"])
    s4, t4 = scale_shift(raw["conv4"], raw["bn4"])

    C1, Cin = w1.shape[0], w1.shape[1]
    C2 = w2.shape[0]
    cin_pad = -(-Cin // 8) * 8          # keep im2col sublane pieces 8-aligned

    # (5,1) convs: OIHW (Co, Ci, 5, 1) -> tap-major columns (Co, 5*Ci_pad),
    # BN scale folded into the weight (column order k*Ci + ci matches im2col).
    w1m = jnp.transpose(w1[:, :, :, 0] * s1[:, None, None], (0, 2, 1))
    w1m = jnp.pad(w1m, ((0, 0), (0, 0), (0, cin_pad - Cin)))
    w1m = w1m.reshape(C1, 5 * cin_pad)
    w3m = jnp.transpose(w3[:, :, :, 0] * s3[:, None, None], (0, 2, 1))
    w3m = w3m.reshape(C1, 5 * C2)
    # 1x1 convs: (Co, Ci) with BN scale folded in.
    w2m = w2[:, :, 0, 0] * s2[:, None]
    w4m = w4[:, :, 0, 0] * s4[:, None]

    f32 = lambda a: a.astype(jnp.float32)
    return (f32(w1m), f32(t1[:, None]), f32(w2m), f32(t2[:, None]),
            f32(w3m), f32(t3[:, None]), f32(w4m), f32(t4[:, None]))


# --------------------------- pure-JAX reference ------------------------------


def ref_forward(x, raw, eps=1e-5):
    def conv(x, wb):
        w, b = wb
        y = jax.lax.conv_general_dilated(
            x, w, (1, 1), "VALID",
            dimension_numbers=("NCHW", "OIHW", "NCHW"))
        return y + b[None, :, None, None]

    def bn(x, p):
        gamma, beta, mean, var = p
        return ((x - mean[None, :, None, None])
                / jnp.sqrt(var[None, :, None, None] + eps)
                * gamma[None, :, None, None] + beta[None, :, None, None])

    def pad_h(x):
        return jnp.pad(x, ((0, 0), (0, 0), (2, 2), (0, 0)))

    h = jax.nn.relu(bn(conv(x, raw["conv1"]), raw["bn1"]))
    h = pad_h(h)
    h = jax.nn.relu(bn(conv(h, raw["conv2"]), raw["bn2"]))
    h = jax.nn.relu(bn(conv(h, raw["conv3"]), raw["bn3"]))
    h = pad_h(h)
    h = bn(conv(h, raw["conv4"]), raw["bn4"])
    return h


# ----------------------------------- main ------------------------------------


if __name__ == "__main__":
    N, INP_DIM, H, W = 2, 4, 16, 16
    MOD_DIM1, MOD_DIM2 = 32, 16

    key = jax.random.PRNGKey(0)
    kx, kp = jax.random.split(key)
    x = jax.random.normal(kx, (N, INP_DIM, H, W), jnp.float32)

    raw = make_raw_params(kp, INP_DIM, MOD_DIM1, MOD_DIM2)
    folded = fold_params(raw)

    out = jax.block_until_ready(mynet_forward(x, folded))
    assert out.shape == (N, MOD_DIM2, H, W), out.shape

    ref = jax.block_until_ready(ref_forward(x, raw))
    err = float(jnp.max(jnp.abs(out - ref)))
    # Operands are f32 end-to-end, so the error is expected to be tiny
    # (~1e-5 from BN folding / accumulation order); the bound below is loose
    # only to also cover a reduced-precision internal matmul pass.
    if not jnp.allclose(out, ref, rtol=3e-2, atol=3e-2):
        raise AssertionError(f"mismatch: max abs err = {err}")
    print("KERNEL_OK")
</pallas_src>

<mosaic_0001>
module attributes {stable_mosaic.version = 11 : i64} {
  func.func @_mynet_kernel(%arg0: i32, %arg1: memref<1x8x640xf32, #tpu.memory_space<vmem>>, %arg2: memref<1x512xf32, #tpu.memory_space<vmem>>, %arg3: memref<1x384xf32, #tpu.memory_space<vmem>>, %arg4: memref<32x40xf32, #tpu.memory_space<vmem>>, %arg5: memref<32x1xf32, #tpu.memory_space<vmem>>, %arg6: memref<16x32xf32, #tpu.memory_space<vmem>>, %arg7: memref<16x1xf32, #tpu.memory_space<vmem>>, %arg8: memref<32x80xf32, #tpu.memory_space<vmem>>, %arg9: memref<32x1xf32, #tpu.memory_space<vmem>>, %arg10: memref<16x32xf32, #tpu.memory_space<vmem>>, %arg11: memref<16x1xf32, #tpu.memory_space<vmem>>, %arg12: memref<1x16x384xf32, #tpu.memory_space<vmem>>) attributes {dimension_semantics = [#tpu.dimension_semantics<parallel>], iteration_bounds = array<i64: 2>, scalar_prefetch = 0 : i64, scratch_operands = 0 : i64, tpu.core_type = #tpu.core_type<tc>, window_params = [{transform_indices = @transform_0, window_bounds = array<i64: 1, 8, 640>}, {pipeline_mode = #tpu.pipeline_mode<synchronous>, transform_indices = @transform_1, window_bounds = array<i64: 1, 512>}, {pipeline_mode = #tpu.pipeline_mode<synchronous>, transform_indices = @transform_2, window_bounds = array<i64: 1, 384>}, {pipeline_mode = #tpu.pipeline_mode<synchronous>, transform_indices = @transform_3, window_bounds = array<i64: 32, 40>}, {pipeline_mode = #tpu.pipeline_mode<synchronous>, transform_indices = @transform_4, window_bounds = array<i64: 32, 1>}, {pipeline_mode = #tpu.pipeline_mode<synchronous>, transform_indices = @transform_5, window_bounds = array<i64: 16, 32>}, {pipeline_mode = #tpu.pipeline_mode<synchronous>, transform_indices = @transform_6, window_bounds = array<i64: 16, 1>}, {pipeline_mode = #tpu.pipeline_mode<synchronous>, transform_indices = @transform_7, window_bounds = array<i64: 32, 80>}, {pipeline_mode = #tpu.pipeline_mode<synchronous>, transform_indices = @transform_8, window_bounds = array<i64: 32, 1>}, {pipeline_mode = #tpu.pipeline_mode<synchronous>, transform_indices = @transform_9, window_bounds = array<i64: 16, 32>}, {pipeline_mode = #tpu.pipeline_mode<synchronous>, transform_indices = @transform_10, window_bounds = array<i64: 16, 1>}, {transform_indices = @transform_11, window_bounds = array<i64: 1, 16, 384>}]} {
    %c0 = arith.constant 0 : index
    %c0_0 = arith.constant 0 : index
    %c0_1 = arith.constant 0 : index
    %0 = vector.load %arg1[%c0, %c0_0, %c0_1] : memref<1x8x640xf32, #tpu.memory_space<vmem>>, vector<1x8x640xf32>
    %1 = vector.shape_cast %0 : vector<1x8x640xf32> to vector<8x640xf32>
    %2 = vector.extract_strided_slice %1 {offsets = [0, 0], sizes = [8, 512], strides = [1, 1]} : vector<8x640xf32> to vector<8x512xf32>
    %3 = vector.extract_strided_slice %1 {offsets = [0, 16], sizes = [8, 512], strides = [1, 1]} : vector<8x640xf32> to vector<8x512xf32>
    %4 = vector.extract_strided_slice %1 {offsets = [0, 32], sizes = [8, 512], strides = [1, 1]} : vector<8x640xf32> to vector<8x512xf32>
    %5 = vector.extract_strided_slice %1 {offsets = [0, 48], sizes = [8, 512], strides = [1, 1]} : vector<8x640xf32> to vector<8x512xf32>
    %6 = vector.extract_strided_slice %1 {offsets = [0, 64], sizes = [8, 512], strides = [1, 1]} : vector<8x640xf32> to vector<8x512xf32>
    %7 = tpu.concatenate %2, %3, %4, %5, %6 in 0 : vector<8x512xf32>, vector<8x512xf32>, vector<8x512xf32>, vector<8x512xf32>, vector<8x512xf32> -> vector<40x512xf32>
    %c0_2 = arith.constant 0 : index
    %c0_3 = arith.constant 0 : index
    %8 = vector.load %arg4[%c0_2, %c0_3] : memref<32x40xf32, #tpu.memory_space<vmem>>, vector<32x40xf32>
    %cst = arith.constant dense<0.000000e+00> : vector<32x512xf32>
    %9 = tpu.matmul %8, %7, %cst {dimension_numbers = #tpu.dot_dimension_numbers<[1], [0], [0], [1], [0, 0, 1, 1], [], []>} : vector<32x40xf32>, vector<40x512xf32>, vector<32x512xf32> -> vector<32x512xf32>
    %c0_4 = arith.constant 0 : index
    %c0_5 = arith.constant 0 : index
    %10 = vector.load %arg5[%c0_4, %c0_5] : memref<32x1xf32, #tpu.memory_space<vmem>>, vector<32x1xf32>
    %11 = vector.broadcast %10 : vector<32x1xf32> to vector<32x512xf32>
    %12 = arith.addf %9, %11 : vector<32x512xf32>
    %cst_6 = arith.constant 0.000000e+00 : f32
    %13 = vector.broadcast %cst_6 : f32 to vector<32x512xf32>
    %14 = arith.maximumf %12, %13 : vector<32x512xf32>
    %c0_7 = arith.constant 0 : index
    %c0_8 = arith.constant 0 : index
    %15 = vector.load %arg2[%c0_7, %c0_8] : memref<1x512xf32, #tpu.memory_space<vmem>>, vector<1x512xf32>
    %16 = vector.broadcast %15 : vector<1x512xf32> to vector<32x512xf32>
    %17 = arith.mulf %14, %16 : vector<32x512xf32>
    %c0_9 = arith.constant 0 : index
    %c0_10 = arith.constant 0 : index
    %18 = vector.load %arg6[%c0_9, %c0_10] : memref<16x32xf32, #tpu.memory_space<vmem>>, vector<16x32xf32>
    %cst_11 = arith.constant dense<0.000000e+00> : vector<16x512xf32>
    %19 = tpu.matmul %18, %17, %cst_11 {dimension_numbers = #tpu.dot_dimension_numbers<[1], [0], [0], [1], [0, 0, 1, 1], [], []>} : vector<16x32xf32>, vector<32x512xf32>, vector<16x512xf32> -> vector<16x512xf32>
    %c0_12 = arith.constant 0 : index
    %c0_13 = arith.constant 0 : index
    %20 = vector.load %arg7[%c0_12, %c0_13] : memref<16x1xf32, #tpu.memory_space<vmem>>, vector<16x1xf32>
    %21 = vector.broadcast %20 : vector<16x1xf32> to vector<16x512xf32>
    %22 = arith.addf %19, %21 : vector<16x512xf32>
    %cst_14 = arith.constant 0.000000e+00 : f32
    %23 = vector.broadcast %cst_14 : f32 to vector<16x512xf32>
    %24 = arith.maximumf %22, %23 : vector<16x512xf32>
    %25 = vector.extract_strided_slice %24 {offsets = [0, 0], sizes = [16, 384], strides = [1, 1]} : vector<16x512xf32> to vector<16x384xf32>
    %26 = vector.extract_strided_slice %24 {offsets = [0, 16], sizes = [16, 384], strides = [1, 1]} : vector<16x512xf32> to vector<16x384xf32>
    %27 = vector.extract_strided_slice %24 {offsets = [0, 32], sizes = [16, 384], strides = [1, 1]} : vector<16x512xf32> to vector<16x384xf32>
    %28 = vector.extract_strided_slice %24 {offsets = [0, 48], sizes = [16, 384], strides = [1, 1]} : vector<16x512xf32> to vector<16x384xf32>
    %29 = vector.extract_strided_slice %24 {offsets = [0, 64], sizes = [16, 384], strides = [1, 1]} : vector<16x512xf32> to vector<16x384xf32>
    %30 = tpu.concatenate %25, %26, %27, %28, %29 in 0 : vector<16x384xf32>, vector<16x384xf32>, vector<16x384xf32>, vector<16x384xf32>, vector<16x384xf32> -> vector<80x384xf32>
    %c0_15 = arith.constant 0 : index
    %c0_16 = arith.constant 0 : index
    %31 = vector.load %arg8[%c0_15, %c0_16] : memref<32x80xf32, #tpu.memory_space<vmem>>, vector<32x80xf32>
    %cst_17 = arith.constant dense<0.000000e+00> : vector<32x384xf32>
    %32 = tpu.matmul %31, %30, %cst_17 {dimension_numbers = #tpu.dot_dimension_numbers<[1], [0], [0], [1], [0, 0, 1, 1], [], []>} : vector<32x80xf32>, vector<80x384xf32>, vector<32x384xf32> -> vector<32x384xf32>
    %c0_18 = arith.constant 0 : index
    %c0_19 = arith.constant 0 : index
    %33 = vector.load %arg9[%c0_18, %c0_19] : memref<32x1xf32, #tpu.memory_space<vmem>>, vector<32x1xf32>
    %34 = vector.broadcast %33 : vector<32x1xf32> to vector<32x384xf32>
    %35 = arith.addf %32, %34 : vector<32x384xf32>
    %cst_20 = arith.constant 0.000000e+00 : f32
    %36 = vector.broadcast %cst_20 : f32 to vector<32x384xf32>
    %37 = arith.maximumf %35, %36 : vector<32x384xf32>
    %c0_21 = arith.constant 0 : index
    %c0_22 = arith.constant 0 : index
    %38 = vector.load %arg3[%c0_21, %c0_22] : memref<1x384xf32, #tpu.memory_space<vmem>>, vector<1x384xf32>
    %39 = vector.broadcast %38 : vector<1x384xf32> to vector<32x384xf32>
    %40 = arith.mulf %37, %39 : vector<32x384xf32>
    %c0_23 = arith.constant 0 : index
    %c0_24 = arith.constant 0 : index
    %41 = vector.load %arg10[%c0_23, %c0_24] : memref<16x32xf32, #tpu.memory_space<vmem>>, vector<16x32xf32>
    %cst_25 = arith.constant dense<0.000000e+00> : vector<16x384xf32>
    %42 = tpu.matmul %41, %40, %cst_25 {dimension_numbers = #tpu.dot_dimension_numbers<[1], [0], [0], [1], [0, 0, 1, 1], [], []>} : vector<16x32xf32>, vector<32x384xf32>, vector<16x384xf32> -> vector<16x384xf32>
    %c0_26 = arith.constant 0 : index
    %c0_27 = arith.constant 0 : index
    %43 = vector.load %arg11[%c0_26, %c0_27] : memref<16x1xf32, #tpu.memory_space<vmem>>, vector<16x1xf32>
    %44 = vector.broadcast %43 : vector<16x1xf32> to vector<16x384xf32>
    %45 = arith.addf %42, %44 : vector<16x384xf32>
    %c0_28 = arith.constant 0 : index
    %c0_29 = arith.constant 0 : index
    %c0_30 = arith.constant 0 : index
    %46 = vector.load %arg12[%c0_28, %c0_29, %c0_30] : memref<1x16x384xf32, #tpu.memory_space<vmem>>, vector<1x16x384xf32>
    %47 = vector.shape_cast %46 : vector<1x16x384xf32> to vector<16x384xf32>
    %48 = vector.shape_cast %45 : vector<16x384xf32> to vector<1x16x384xf32>
    tpu.vector_store %arg12[%c0_28, %c0_29, %c0_30], %48 {strides = array<i32>} : memref<1x16x384xf32, #tpu.memory_space<vmem>>, vector<1x16x384xf32>,
    return
  }
  func.func @transform_0(%arg0: i32) -> (i32, i32, i32) {
    %c0_i32 = arith.constant 0 : i32
    %c0_i32_0 = arith.constant 0 : i32
    %c0_i32_1 = arith.constant 0 : i32
    return %arg0, %c0_i32, %c0_i32_0 : i32, i32, i32
  }
  func.func @transform_1(%arg0: i32) -> (i32, i32) {
    %c0_i32 = arith.constant 0 : i32
    %c0_i32_0 = arith.constant 0 : i32
    %c0_i32_1 = arith.constant 0 : i32
    return %c0_i32, %c0_i32_0 : i32, i32
  }
  func.func @transform_2(%arg0: i32) -> (i32, i32) {
    %c0_i32 = arith.constant 0 : i32
    %c0_i32_0 = arith.constant 0 : i32
    %c0_i32_1 = arith.constant 0 : i32
    return %c0_i32, %c0_i32_0 : i32, i32
  }
  func.func @transform_3(%arg0: i32) -> (i32, i32) {
    %c0_i32 = arith.constant 0 : i32
    %c0_i32_0 = arith.constant 0 : i32
    %c0_i32_1 = arith.constant 0 : i32
    return %c0_i32, %c0_i32_0 : i32, i32
  }
  func.func @transform_4(%arg0: i32) -> (i32, i32) {
    %c0_i32 = arith.constant 0 : i32
    %c0_i32_0 = arith.constant 0 : i32
    %c0_i32_1 = arith.constant 0 : i32
    return %c0_i32, %c0_i32_0 : i32, i32
  }
  func.func @transform_5(%arg0: i32) -> (i32, i32) {
    %c0_i32 = arith.constant 0 : i32
    %c0_i32_0 = arith.constant 0 : i32
    %c0_i32_1 = arith.constant 0 : i32
    return %c0_i32, %c0_i32_0 : i32, i32
  }
  func.func @transform_6(%arg0: i32) -> (i32, i32) {
    %c0_i32 = arith.constant 0 : i32
    %c0_i32_0 = arith.constant 0 : i32
    %c0_i32_1 = arith.constant 0 : i32
    return %c0_i32, %c0_i32_0 : i32, i32
  }
  func.func @transform_7(%arg0: i32) -> (i32, i32) {
    %c0_i32 = arith.constant 0 : i32
    %c0_i32_0 = arith.constant 0 : i32
    %c0_i32_1 = arith.constant 0 : i32
    return %c0_i32, %c0_i32_0 : i32, i32
  }
  func.func @transform_8(%arg0: i32) -> (i32, i32) {
    %c0_i32 = arith.constant 0 : i32
    %c0_i32_0 = arith.constant 0 : i32
    %c0_i32_1 = arith.constant 0 : i32
    return %c0_i32, %c0_i32_0 : i32, i32
  }
  func.func @transform_9(%arg0: i32) -> (i32, i32) {
    %c0_i32 = arith.constant 0 : i32
    %c0_i32_0 = arith.constant 0 : i32
    %c0_i32_1 = arith.constant 0 : i32
    return %c0_i32, %c0_i32_0 : i32, i32
  }
  func.func @transform_10(%arg0: i32) -> (i32, i32) {
    %c0_i32 = arith.constant 0 : i32
    %c0_i32_0 = arith.constant 0 : i32
    %c0_i32_1 = arith.constant 0 : i32
    return %c0_i32, %c0_i32_0 : i32, i32
  }
  func.func @transform_11(%arg0: i32) -> (i32, i32, i32) {
    %c0_i32 = arith.constant 0 : i32
    %c0_i32_0 = arith.constant 0 : i32
    %c0_i32_1 = arith.constant 0 : i32
    return %arg0, %c0_i32, %c0_i32_0 : i32, i32, i32
  }
}

</mosaic_0001>

<llo_original>
// kernel: mynet_forward.1
$region0: #{mynet_forward.1}
  #allocation0 [shape = 'u32[]', space=smem, size = 0x4, offset = 0x4, fixed_abs, tag = 'smem constant byte address 0x4 - core index']
  #allocation1 [shape = 'u32[72,128]{1,0:T(1,128)}', space=vmem, size = 0x9000, scoped, tag = 'internal scratch']
  %s0 = inlined_call_operand.vmem [shape: f32[2,8,640], index: 0, kind: input, shape index: {}]
  %s1 = inlined_call_operand.vmem [shape: f32[1,512], index: 1, kind: input, shape index: {}]
  %s2 = inlined_call_operand.vmem [shape: f32[1,384], index: 2, kind: input, shape index: {}]
  %s3 = inlined_call_operand.vmem [shape: f32[32,40], index: 3, kind: input, shape index: {}]
  %s4 = inlined_call_operand.vmem [shape: f32[32,1], index: 4, kind: input, shape index: {}]
  %s5 = inlined_call_operand.vmem [shape: f32[16,32], index: 5, kind: input, shape index: {}]
  %s6 = inlined_call_operand.vmem [shape: f32[16,1], index: 6, kind: input, shape index: {}]
  %s7 = inlined_call_operand.vmem [shape: f32[32,80], index: 7, kind: input, shape index: {}]
  %s8 = inlined_call_operand.vmem [shape: f32[32,1], index: 8, kind: input, shape index: {}]
  %s9 = inlined_call_operand.vmem [shape: f32[16,32], index: 9, kind: input, shape index: {}]
  %s10 = inlined_call_operand.vmem [shape: f32[16,1], index: 10, kind: input, shape index: {}]
  %s11 = inlined_call_operand.vmem [shape: f32[2,16,384], index: 11, kind: output, shape index: {}]
  %s12 = sld [smem:[#allocation0]]
  $region77: #{mynet_forward.1} parent=0
    _
  %s14 = ssub.s32 1, %s12
  %s15 = scalar_select 0, %s14, %s12
  loop: start=0, step=1, limit=4
  $region2: #{mynet_forward.1} parent=0 // loop_pre_header
    _
  $region3: #{mynet_forward.1} parent=0 // loop_header
    %s17 = sphi 0, %s21
    %p18 = scmp.ge.s32.totalorder %s17, 4
    %s27 = sphi 0, %s29
    %s30 = sphi 0, %s27
    %s31 = sphi 0, %s30
    %s47 = sphi 0, %s31
    %s51 = sphi 0, %s51
    %s53 = sphi 0, %s51
    %s54 = sphi 0, %s53
    %s68 = sphi 0, %s54
    %s72 = sphi 0, %s72
    %s74 = sphi 0, %s72
    %s75 = sphi 0, %s74
    %s89 = sphi 0, %s75
    %s93 = sphi 0, %s93
    %s95 = sphi 0, %s93
    %s96 = sphi 0, %s95
    %s110 = sphi 0, %s96
    %s114 = sphi 0, %s114
    %s116 = sphi 0, %s114
    %s117 = sphi 0, %s116
    %s131 = sphi 0, %s117
    %s135 = sphi 0, %s135
    %s137 = sphi 0, %s135
    %s138 = sphi 0, %s137
    %s152 = sphi 0, %s138
    %s156 = sphi 0, %s156
    %s158 = sphi 0, %s156
    %s159 = sphi 0, %s158
    %s173 = sphi 0, %s159
    %s177 = sphi 0, %s177
    %s179 = sphi 0, %s177
    %s180 = sphi 0, %s179
    %s194 = sphi 0, %s180
    %s198 = sphi 0, %s198
    %s200 = sphi 0, %s198
    %s201 = sphi 0, %s200
    %s215 = sphi 0, %s201
    %s219 = sphi 0, %s219
    %s221 = sphi 0, %s219
    %s222 = sphi 0, %s221
    %s236 = sphi 0, %s222
    %s240 = sphi 0, %s240
    %s242 = sphi 0, %s240
    %s243 = sphi 0, %s242
    %s257 = sphi 0, %s243
    %s263 = sphi 0, %s265
    %s266 = sphi 0, %s263
    %s267 = sphi 0, %s266
    %s283 = sphi 0, %s267
  $region4: #{mynet_forward.1} parent=0 // loop_header_branch
    %20 = sbr.rel (%p18) target = $region8
  $region5: #{mynet_forward.1} parent=0 // loop_body
    %s22 = ssub.s32 %s17, 1
    %s23 = ssub.s32 %s17, 2
    %s24 = sadd.s32 %s17, 1
    %s25 = ssub.s32 %s17, %s24
    %p26 = scmp.eq.s32.totalorder %s25, 0
    %s28 = sadd.s32 %s27, 1
    %s29 = scalar_select %p26, %s27, %s28
    %p32 = pneg %p26
    %p33 = scmp.eq.s32.totalorder %s17, 1
    %p34 = por %p32, %p33
    %p35 = scmp.ne.s32.totalorder %s27, %s30
    %p36 = scmp.eq.s32.totalorder %s17, 0
    %p37 = por %p35, %p36
    %p38 = scmp.ne.s32.totalorder %s27, %s30
    %p39 = scmp.eq.s32.totalorder %s22, 1
    %p40 = por %p38, %p39
    %p41 = scmp.ne.s32.totalorder %s30, %s31
    %p42 = scmp.eq.s32.totalorder %s22, 0
    %p43 = por %p41, %p42
    %p44 = scmp.ne.s32.totalorder %s30, %s31
    %p45 = scmp.eq.s32.totalorder %s23, 1
    %p46 = por %p44, %p45
    %p48 = scmp.ne.s32.totalorder %s31, %s47
    %p49 = scmp.eq.s32.totalorder %s23, 0
    %p50 = por %p48, %p49
    %s52 = sadd.s32 %s51, 1
    %p55 = scmp.eq.s32.totalorder %s17, 1
    %p56 = scmp.ne.s32.totalorder %s51, %s53
    %p57 = scmp.eq.s32.totalorder %s17, 0
    %p58 = por %p56, %p57
    %p59 = scmp.ne.s32.totalorder %s51, %s53
    %p60 = scmp.eq.s32.totalorder %s22, 1
    %p61 = por %p59, %p60
    %p62 = scmp.ne.s32.totalorder %s53, %s54
    %p63 = scmp.eq.s32.totalorder %s22, 0
    %p64 = por %p62, %p63
    %p65 = scmp.ne.s32.totalorder %s53, %s54
    %p66 = scmp.eq.s32.totalorder %s23, 1
    %p67 = por %p65, %p66
    %p69 = scmp.ne.s32.totalorder %s54, %s68
    %p70 = scmp.eq.s32.totalorder %s23, 0
    %p71 = por %p69, %p70
    %s73 = sadd.s32 %s72, 1
    %p76 = scmp.eq.s32.totalorder %s17, 1
    %p77 = scmp.ne.s32.totalorder %s72, %s74
    %p78 = scmp.eq.s32.totalorder %s17, 0
    %p79 = por %p77, %p78
    %p80 = scmp.ne.s32.totalorder %s72, %s74
    %p81 = scmp.eq.s32.totalorder %s22, 1
    %p82 = por %p80, %p81
    %p83 = scmp.ne.s32.totalorder %s74, %s75
    %p84 = scmp.eq.s32.totalorder %s22, 0
    %p85 = por %p83, %p84
    %p86 = scmp.ne.s32.totalorder %s74, %s75
    %p87 = scmp.eq.s32.totalorder %s23, 1
    %p88 = por %p86, %p87
    %p90 = scmp.ne.s32.totalorder %s75, %s89
    %p91 = scmp.eq.s32.totalorder %s23, 0
    %p92 = por %p90, %p91
    %s94 = sadd.s32 %s93, 1
    %p97 = scmp.eq.s32.totalorder %s17, 1
    %p98 = scmp.ne.s32.totalorder %s93, %s95
    %p99 = scmp.eq.s32.totalorder %s17, 0
    %p100 = por %p98, %p99
    %p101 = scmp.ne.s32.totalorder %s93, %s95
    %p102 = scmp.eq.s32.totalorder %s22, 1
    %p103 = por %p101, %p102
    %p104 = scmp.ne.s32.totalorder %s95, %s96
    %p105 = scmp.eq.s32.totalorder %s22, 0
    %p106 = por %p104, %p105
    %p107 = scmp.ne.s32.totalorder %s95, %s96
    %p108 = scmp.eq.s32.totalorder %s23, 1
    %p109 = por %p107, %p108
    %p111 = scmp.ne.s32.totalorder %s96, %s110
    %p112 = scmp.eq.s32.totalorder %s23, 0
    %p113 = por %p111, %p112
    %s115 = sadd.s32 %s114, 1
    %p118 = scmp.eq.s32.totalorder %s17, 1
    %p119 = scmp.ne.s32.totalorder %s114, %s116
    %p120 = scmp.eq.s32.totalorder %s17, 0
    %p121 = por %p119, %p120
    %p122 = scmp.ne.s32.totalorder %s114, %s116
    %p123 = scmp.eq.s32.totalorder %s22, 1
    %p124 = por %p122, %p123
    %p125 = scmp.ne.s32.totalorder %s116, %s117
    %p126 = scmp.eq.s32.totalorder %s22, 0
    %p127 = por %p125, %p126
    %p128 = scmp.ne.s32.totalorder %s116, %s117
    %p129 = scmp.eq.s32.totalorder %s23, 1
    %p130 = por %p128, %p129
    %p132 = scmp.ne.s32.totalorder %s117, %s131
    %p133 = scmp.eq.s32.totalorder %s23, 0
    %p134 = por %p132, %p133
    %s136 = sadd.s32 %s135, 1
    %p139 = scmp.eq.s32.totalorder %s17, 1
    %p140 = scmp.ne.s32.totalorder %s135, %s137
    %p141 = scmp.eq.s32.totalorder %s17, 0
    %p142 = por %p140, %p141
    %p143 = scmp.ne.s32.totalorder %s135, %s137
    %p144 = scmp.eq.s32.totalorder %s22, 1
    %p145 = por %p143, %p144
    %p146 = scmp.ne.s32.totalorder %s137, %s138
    %p147 = scmp.eq.s32.totalorder %s22, 0
    %p148 = por %p146, %p147
    %p149 = scmp.ne.s32.totalorder %s137, %s138
    %p150 = scmp.eq.s32.totalorder %s23, 1
    %p151 = por %p149, %p150
    %p153 = scmp.ne.s32.totalorder %s138, %s152
    %p154 = scmp.eq.s32.totalorder %s23, 0
    %p155 = por %p153, %p154
    %s157 = sadd.s32 %s156, 1
    %p160 = scmp.eq.s32.totalorder %s17, 1
    %p161 = scmp.ne.s32.totalorder %s156, %s158
    %p162 = scmp.eq.s32.totalorder %s17, 0
    %p163 = por %p161, %p162
    %p164 = scmp.ne.s32.totalorder %s156, %s158
    %p165 = scmp.eq.s32.totalorder %s22, 1
    %p166 = por %p164, %p165
    %p167 = scmp.ne.s32.totalorder %s158, %s159
    %p168 = scmp.eq.s32.totalorder %s22, 0
    %p169 = por %p167, %p168
    %p170 = scmp.ne.s32.totalorder %s158, %s159
    %p171 = scmp.eq.s32.totalorder %s23, 1
    %p172 = por %p170, %p171
    %p174 = scmp.ne.s32.totalorder %s159, %s173
    %p175 = scmp.eq.s32.totalorder %s23, 0
    %p176 = por %p174, %p175
    %s178 = sadd.s32 %s177, 1
    %p181 = scmp.eq.s32.totalorder %s17, 1
    %p182 = scmp.ne.s32.totalorder %s177, %s179
    %p183 = scmp.eq.s32.totalorder %s17, 0
    %p184 = por %p182, %p183
    %p185 = scmp.ne.s32.totalorder %s177, %s179
    %p186 = scmp.eq.s32.totalorder %s22, 1
    %p187 = por %p185, %p186
    %p188 = scmp.ne.s32.totalorder %s179, %s180
    %p189 = scmp.eq.s32.totalorder %s22, 0
    %p190 = por %p188, %p189
    %p191 = scmp.ne.s32.totalorder %s179, %s180
    %p192 = scmp.eq.s32.totalorder %s23, 1
    %p193 = por %p191, %p192
    %p195 = scmp.ne.s32.totalorder %s180, %s194
    %p196 = scmp.eq.s32.totalorder %s23, 0
    %p197 = por %p195, %p196
    %s199 = sadd.s32 %s198, 1
    %p202 = scmp.eq.s32.totalorder %s17, 1
    %p203 = scmp.ne.s32.totalorder %s198, %s200
    %p204 = scmp.eq.s32.totalorder %s17, 0
    %p205 = por %p203, %p204
    %p206 = scmp.ne.s32.totalorder %s198, %s200
    %p207 = scmp.eq.s32.totalorder %s22, 1
    %p208 = por %p206, %p207
    %p209 = scmp.ne.s32.totalorder %s200, %s201
    %p210 = scmp.eq.s32.totalorder %s22, 0
    %p211 = por %p209, %p210
    %p212 = scmp.ne.s32.totalorder %s200, %s201
    %p213 = scmp.eq.s32.totalorder %s23, 1
    %p214 = por %p212, %p213
    %p216 = scmp.ne.s32.totalorder %s201, %s215
    %p217 = scmp.eq.s32.totalorder %s23, 0
    %p218 = por %p216, %p217
    %s220 = sadd.s32 %s219, 1
    %p223 = scmp.eq.s32.totalorder %s17, 1
    %p224 = scmp.ne.s32.totalorder %s219, %s221
    %p225 = scmp.eq.s32.totalorder %s17, 0
    %p226 = por %p224, %p225
    %p227 = scmp.ne.s32.totalorder %s219, %s221
    %p228 = scmp.eq.s32.totalorder %s22, 1
    %p229 = por %p227, %p228
    %p230 = scmp.ne.s32.totalorder %s221, %s222
    %p231 = scmp.eq.s32.totalorder %s22, 0
    %p232 = por %p230, %p231
    %p233 = scmp.ne.s32.totalorder %s221, %s222
    %p234 = scmp.eq.s32.totalorder %s23, 1
    %p235 = por %p233, %p234
    %p237 = scmp.ne.s32.totalorder %s222, %s236
    %p238 = scmp.eq.s32.totalorder %s23, 0
    %p239 = por %p237, %p238
    %s241 = sadd.s32 %s240, 1
    %p244 = scmp.eq.s32.totalorder %s17, 1
    %p245 = scmp.ne.s32.totalorder %s240, %s242
    %p246 = scmp.eq.s32.totalorder %s17, 0
    %p247 = por %p245, %p246
    %p248 = scmp.ne.s32.totalorder %s240, %s242
    %p249 = scmp.eq.s32.totalorder %s22, 1
    %p250 = por %p248, %p249
    %p251 = scmp.ne.s32.totalorder %s242, %s243
    %p252 = scmp.eq.s32.totalorder %s22, 0
    %p253 = por %p251, %p252
    %p254 = scmp.ne.s32.totalorder %s242, %s243
    %p255 = scmp.eq.s32.totalorder %s23, 1
    %p256 = por %p254, %p255
    %p258 = scmp.ne.s32.totalorder %s243, %s257
    %p259 = scmp.eq.s32.totalorder %s23, 0
    %p260 = por %p258, %p259
    %s261 = ssub.s32 %s17, %s24
    %p262 = scmp.eq.s32.totalorder %s261, 0
    %s264 = sadd.s32 %s263, 1
    %s265 = scalar_select %p262, %s263, %s264
    %p268 = pneg %p262
    %p269 = scmp.eq.s32.totalorder %s17, 1
    %p270 = por %p268, %p269
    %p271 = scmp.ne.s32.totalorder %s263, %s266
    %p272 = scmp.eq.s32.totalorder %s17, 0
    %p273 = por %p271, %p272
    %p274 = scmp.ne.s32.totalorder %s263, %s266
    %p275 = scmp.eq.s32.totalorder %s22, 1
    %p276 = por %p274, %p275
    %p277 = scmp.ne.s32.totalorder %s266, %s267
    %p278 = scmp.eq.s32.totalorder %s22, 0
    %p279 = por %p277, %p278
    %p280 = scmp.ne.s32.totalorder %s266, %s267
    %p281 = scmp.eq.s32.totalorder %s23, 1
    %p282 = por %p280, %p281
    %p284 = scmp.ne.s32.totalorder %s267, %s283
    %p285 = scmp.eq.s32.totalorder %s23, 0
    %p286 = por %p284, %p285
    %p287 = scmp.le.s32.totalorder 1, %s17
    %p288 = scmp.lt.s32.totalorder %s17, 3
    %p289 = pnand %p287, %p288
    %p290 = pneg %p289
    // Predicated region
    $region9: #{mynet_forward.1} parent=5 // pred_check
      _
    $region10: #{mynet_forward.1} parent=5 // pred_check_branch
      %292 = sbr.rel (%p289) target = $region12
    $region11: #{mynet_forward.1} parent=5 // pred_region
      %s293 = ssub.s32 %s17, 1
      // Predicated region
      $region13: #{mynet_forward.1} parent=11 // pred_check
        %p294 = pneg %p64
      $region14: #{mynet_forward.1} parent=11 // pred_check_branch
        %296 = sbr.rel (%p294) target = $region16
      $region15: #{mynet_forward.1} parent=11 // pred_region
        _
      $region16: #{mynet_forward.1} parent=11 // pred_fallthru
        _
      // Predicated region
      $region17: #{mynet_forward.1} parent=11 // pred_check
        %p297 = pneg %p85
      $region18: #{mynet_forward.1} parent=11 // pred_check_branch
        %299 = sbr.rel (%p297) target = $region20
      $region19: #{mynet_forward.1} parent=11 // pred_region
        _
      $region20: #{mynet_forward.1} parent=11 // pred_fallthru
        _
      // Predicated region
      $region21: #{mynet_forward.1} parent=11 // pred_check
        %p300 = pneg %p106
      $region22: #{mynet_forward.1} parent=11 // pred_check_branch
        %302 = sbr.rel (%p300) target = $region24
      $region23: #{mynet_forward.1} parent=11 // pred_region
        _
      $region24: #{mynet_forward.1} parent=11 // pred_fallthru
        _
      // Predicated region
      $region25: #{mynet_forward.1} parent=11 // pred_check
        %p303 = pneg %p127
      $region26: #{mynet_forward.1} parent=11 // pred_check_branch
        %305 = sbr.rel (%p303) target = $region28
      $region27: #{mynet_forward.1} parent=11 // pred_region
        _
      $region28: #{mynet_forward.1} parent=11 // pred_fallthru
        _
      // Predicated region
      $region29: #{mynet_forward.1} parent=11 // pred_check
        %p306 = pneg %p148
      $region30: #{mynet_forward.1} parent=11 // pred_check_branch
        %308 = sbr.rel (%p306) target = $region32
      $region31: #{mynet_forward.1} parent=11 // pred_region
        _
      $region32: #{mynet_forward.1} parent=11 // pred_fallthru
        _
      // Predicated region
      $region33: #{mynet_forward.1} parent=11 // pred_check
        %p309 = pneg %p169
      $region34: #{mynet_forward.1} parent=11 // pred_check_branch
        %311 = sbr.rel (%p309) target = $region36
      $region35: #{mynet_forward.1} parent=11 // pred_region
        _
      $region36: #{mynet_forward.1} parent=11 // pred_fallthru
        _
      // Predicated region
      $region37: #{mynet_forward.1} parent=11 // pred_check
        %p312 = pneg %p190
      $region38: #{mynet_forward.1} parent=11 // pred_check_branch
        %314 = sbr.rel (%p312) target = $region40
      $region39: #{mynet_forward.1} parent=11 // pred_region
        _
      $region40: #{mynet_forward.1} parent=11 // pred_fallthru
        _
      // Predicated region
      $region41: #{mynet_forward.1} parent=11 // pred_check
        %p315 = pneg %p211
      $region42: #{mynet_forward.1} parent=11 // pred_check_branch
        %317 = sbr.rel (%p315) target = $region44
      $region43: #{mynet_forward.1} parent=11 // pred_region
        _
      $region44: #{mynet_forward.1} parent=11 // pred_fallthru
        _
      // Predicated region
      $region45: #{mynet_forward.1} parent=11 // pred_check
        %p318 = pneg %p232
      $region46: #{mynet_forward.1} parent=11 // pred_check_branch
        %320 = sbr.rel (%p318) target = $region48
      $region47: #{mynet_forward.1} parent=11 // pred_region
        _
      $region48: #{mynet_forward.1} parent=11 // pred_fallthru
        _
      // Predicated region
      $region49: #{mynet_forward.1} parent=11 // pred_check
        %p321 = pneg %p253
      $region50: #{mynet_forward.1} parent=11 // pred_check_branch
        %323 = sbr.rel (%p321) target = $region52
      $region51: #{mynet_forward.1} parent=11 // pred_region
        _
      $region52: #{mynet_forward.1} parent=11 // pred_fallthru
        _
    $region12: #{mynet_forward.1} parent=5 // pred_fallthru
      _
    %p324 = scmp.lt.s32.totalorder %s17, 2
    // Predicated region
    $region53: #{mynet_forward.1} parent=5 // pred_check
      %p325 = pneg %p324
    $region54: #{mynet_forward.1} parent=5 // pred_check_branch
      %327 = sbr.rel (%p325) target = $region56
    $region55: #{mynet_forward.1} parent=5 // pred_region
      // Predicated region
      $region57: #{mynet_forward.1} parent=55 // pred_check
        %p328 = pneg %p37
      $region58: #{mynet_forward.1} parent=55 // pred_check_branch
        %330 = sbr.rel (%p328) target = $region60
      $region59: #{mynet_forward.1} parent=55 // pred_region
        %p331 = scmp.lt.s32.totalorder %s17, 1
        %s332 = scalar_select %p331, %s17, 1
        %s333 = smul.addr %s332, 5
        %s334 = smul.addr %s333, 8
        %s335 = scalar_lea.vmem %s0, %s334
      $region60: #{mynet_forward.1} parent=55 // pred_fallthru
        _
    $region56: #{mynet_forward.1} parent=5 // pred_fallthru
      _
    %p336 = scmp.le.s32.totalorder 1, %s17
    %p337 = scmp.lt.s32.totalorder %s17, 3
    %p338 = pnand %p336, %p337
    %p339 = pneg %p338
    // Predicated region
    $region61: #{mynet_forward.1} parent=5 // pred_check
      _
    $region62: #{mynet_forward.1} parent=5 // pred_check_branch
      %341 = sbr.rel (%p338) target = $region64
    $region63: #{mynet_forward.1} parent=5 // pred_region
      %s342 = ssub.s32 %s17, 1
      %p343 = scmp.lt.s32.totalorder %s22, 1
      %s344 = scalar_select %p343, %s22, 1
      %s345 = smul.addr %s344, 5
      %s346 = smul.addr %s345, 8
      %s347 = scalar_lea.vmem %s0, %s346
      %p348 = pneg %p43
      %p349 = pneg %p40
      %p350 = pneg %p64
      %p351 = pneg %p61
      %p352 = pneg %p85
      %p353 = pneg %p82
      %p354 = pneg %p106
      %p355 = pneg %p103
      %p356 = pneg %p127
      %p357 = pneg %p124
      %p358 = pneg %p148
      %p359 = pneg %p145
      %p360 = pneg %p169
      %p361 = pneg %p166
      %p362 = pneg %p190
      %p363 = pneg %p187
      %p364 = pneg %p211
      %p365 = pneg %p208
      %p366 = pneg %p232
      %p367 = pneg %p229
      %p368 = pneg %p253
      %p369 = pneg %p250
      %p370 = pneg %p279
      %p371 = pneg %p276
      %p372 = scmp.lt.s32.totalorder %s22, 1
      %s373 = scalar_select %p372, %s22, 1
      %s374 = smul.addr %s373, 6
      %s375 = smul.addr %s374, 8
      %s376 = scalar_lea.vmem %s11, %s375
      %p377 = scmp.lt.s32.totalorder %s22, 1
      %s378 = scalar_select %p377, %s22, 1
      %s379 = smul.addr %s378, 5
      %s380 = smul.addr %s379, 8
      %s381 = scalar_lea.vmem %s0, %s380
      %p382 = scmp.lt.s32.totalorder %s22, 1
      %s383 = scalar_select %p382, %s22, 1
      %s384 = smul.addr %s383, 6
      %s385 = smul.addr %s384, 8
      %s386 = scalar_lea.vmem %s11, %s385
      %v387 = vld [vmem:[%s381] sm:$0xff]
      %v388 = vld [vmem:[%s381 + $0x8] sm:$0xff]
      %v389 = vld [vmem:[%s381 + $0x10] sm:$0xff]
      %v390 = vld [vmem:[%s381 + $0x18] sm:$0xff]
      %v391 = vld [vmem:[%s381 + $0x20] sm:$0xff]
      %397 = vrot.lane.b32.xlu0 %v387, 112
      %v398 = vpop.permute.xlu0 %397
      %399 = vrot.lane.b32.xlu0 %v388, 112
      %v400 = vpop.permute.xlu0 %399
      %401 = vrot.lane.b32.xlu0 %v389, 112
      %v402 = vpop.permute.xlu0 %401
      %403 = vrot.lane.b32.xlu0 %v390, 112
      %v404 = vpop.permute.xlu0 %403
      %405 = vrot.lane.b32.xlu0 %v391, 112
      %v406 = vpop.permute.xlu0 %405
      %vm407 = vcmask 916480
      %v408 = vsel %vm407, %v398, %v400
      %v409 = vsel %vm407, %v400, %v402
      %v410 = vsel %vm407, %v402, %v404
      %v411 = vsel %vm407, %v404, %v406
      %416 = vrot.lane.b32.xlu0 %v387, 96
      %v417 = vpop.permute.xlu0 %416
      %418 = vrot.lane.b32.xlu0 %v388, 96
      %v419 = vpop.permute.xlu0 %418
      %420 = vrot.lane.b32.xlu0 %v389, 96
      %v421 = vpop.permute.xlu0 %420
      %422 = vrot.lane.b32.xlu0 %v390, 96
      %v423 = vpop.permute.xlu0 %422
      %424 = vrot.lane.b32.xlu0 %v391, 96
      %v425 = vpop.permute.xlu0 %424
      %vm426 = vcmask 785408
      %v427 = vsel %vm426, %v417, %v419
      %v428 = vsel %vm426, %v419, %v421
      %v429 = vsel %vm426, %v421, %v423
      %v430 = vsel %vm426, %v423, %v425
      %435 = vrot.lane.b32.xlu0 %v387, 80
      %v436 = vpop.permute.xlu0 %435
      %437 = vrot.lane.b32.xlu0 %v388, 80
      %v438 = vpop.permute.xlu0 %437
      %439 = vrot.lane.b32.xlu0 %v389, 80
      %v440 = vpop.permute.xlu0 %439
      %441 = vrot.lane.b32.xlu0 %v390, 80
      %v442 = vpop.permute.xlu0 %441
      %443 = vrot.lane.b32.xlu0 %v391, 80
      %v444 = vpop.permute.xlu0 %443
      %vm445 = vcmask 654336
      %v446 = vsel %vm445, %v436, %v438
      %v447 = vsel %vm445, %v438, %v440
      %v448 = vsel %vm445, %v440, %v442
      %v449 = vsel %vm445, %v442, %v444
      %454 = vrot.lane.b32.xlu0 %v387, 64
      %v455 = vpop.permute.xlu0 %454
      %456 = vrot.lane.b32.xlu0 %v388, 64
      %v457 = vpop.permute.xlu0 %456
      %458 = vrot.lane.b32.xlu0 %v389, 64
      %v459 = vpop.permute.xlu0 %458
      %460 = vrot.lane.b32.xlu0 %v390, 64
      %v461 = vpop.permute.xlu0 %460
      %462 = vrot.lane.b32.xlu0 %v391, 64
      %v463 = vpop.permute.xlu0 %462
      %vm464 = vcmask 523264
      %v465 = vsel %vm464, %v455, %v457
      %v466 = vsel %vm464, %v457, %v459
      %v467 = vsel %vm464, %v459, %v461
      %v468 = vsel %vm464, %v461, %v463
      %v473 = vld [vmem:[%s3] sm:$0xff]
      %v474 = vld [vmem:[%s3 + $0x8] sm:$0xff]
      %v475 = vld [vmem:[%s3 + $0x10] sm:$0xff]
      %v476 = vld [vmem:[%s3 + $0x18] sm:$0xff]
      %v477 = vld [vmem:[%s4] sm:$0xff]
      %v478 = vld [vmem:[%s4 + $0x8] sm:$0xff]
      %v479 = vld [vmem:[%s4 + $0x10] sm:$0xff]
      %v480 = vld [vmem:[%s4 + $0x18] sm:$0xff]
      %482 = vset.pattern.permute.xlu0 0
      %483 = vperm.xlu0 %482, %v477
      %v484 = vpop.permute.xlu0 %483
      %487 = vset.pattern.permute.xlu0 0
      %488 = vperm.xlu0 %487, %v478
      %v489 = vpop.permute.xlu0 %488
      %492 = vset.pattern.permute.xlu0 0
      %493 = vperm.xlu0 %492, %v479
      %v494 = vpop.permute.xlu0 %493
      %497 = vset.pattern.permute.xlu0 0
      %498 = vperm.xlu0 %497, %v480
      %v499 = vpop.permute.xlu0 %498
      %vm501 = vcmask 326656
      %v503 = vsel %vm501, %v473, 0
      %v506 = vsel %vm501, %v474, 0
      %v509 = vsel %vm501, %v475, 0
      %v512 = vsel %vm501, %v476, 0
      %514 = vmatpush.msra.mxu0 0.0
      %515 = vmatpush.msra.mxu0 0.0
      %516 = vmatpush.msra.mxu0 0.0
      %517 = vmatpush.msra.mxu0 0.0
      %518 = vmatpush.msra.mxu0 0.0
      %519 = vmatpush.msra.mxu0 0.0
      %520 = vmatpush.msra.mxu0 0.0
      %521 = vmatpush.msra.mxu0 0.0
      %522 = vmatpush.msra.mxu0 0.0
      %523 = vmatpush.msra.mxu0 0.0
      %524 = vmatpush.msra.mxu0 0.0
      %525 = vmatpush.msra.mxu0 %v465
      %526 = vmatpush.msra.mxu0 %v446
      %527 = vmatpush.msra.mxu0 %v427
      %528 = vmatpush.msra.mxu0 %v408
      %529 = vmatpush.msra.mxu0 %v387
      %530 = vmatmul.f32.gmra.mxu0 %v503
      %v531 = vpop.f32.mrf.mxu0
      %v532 = vadd.f32 %v484, %v531
      %533 = vmatmul.f32.gmra.mxu0 %v506
      %v534 = vpop.f32.mrf.mxu0
      %v535 = vadd.f32 %v489, %v534
      %536 = vmatmul.f32.gmra.mxu0 %v509
      %v537 = vpop.f32.mrf.mxu0
      %v538 = vadd.f32 %v494, %v537
      %539 = vmatmul.f32.gmra.mxu0 %v512
      %v540 = vpop.f32.mrf.mxu0
      %v541 = vadd.f32 %v499, %v540
      %542 = vdwg.mxu0
      %543 = vmatpush.msra.mxu0 0.0
      %544 = vmatpush.msra.mxu0 0.0
      %545 = vmatpush.msra.mxu0 0.0
      %546 = vmatpush.msra.mxu0 0.0
      %547 = vmatpush.msra.mxu0 0.0
      %548 = vmatpush.msra.mxu0 0.0
      %549 = vmatpush.msra.mxu0 0.0
      %550 = vmatpush.msra.mxu0 0.0
      %551 = vmatpush.msra.mxu0 0.0
      %552 = vmatpush.msra.mxu0 0.0
      %553 = vmatpush.msra.mxu0 0.0
      %554 = vmatpush.msra.mxu0 %v466
      %555 = vmatpush.msra.mxu0 %v447
      %556 = vmatpush.msra.mxu0 %v428
      %557 = vmatpush.msra.mxu0 %v409
      %558 = vmatpush.msra.mxu0 %v388
      %559 = vmatmul.f32.gmra.mxu0 %v503
      %v560 = vpop.f32.mrf.mxu0
      %v561 = vadd.f32 %v484, %v560
      %562 = vmatmul.f32.gmra.mxu0 %v506
      %v563 = vpop.f32.mrf.mxu0
      %v564 = vadd.f32 %v489, %v563
      %565 = vmatmul.f32.gmra.mxu0 %v509
      %v566 = vpop.f32.mrf.mxu0
      %v567 = vadd.f32 %v494, %v566
      %568 = vmatmul.f32.gmra.mxu0 %v512
      %v569 = vpop.f32.mrf.mxu0
      %v570 = vadd.f32 %v499, %v569
      %571 = vdwg.mxu0
      %572 = vmatpush.msra.mxu0 0.0
      %573 = vmatpush.msra.mxu0 0.0
      %574 = vmatpush.msra.mxu0 0.0
      %575 = vmatpush.msra.mxu0 0.0
      %576 = vmatpush.msra.mxu0 0.0
      %577 = vmatpush.msra.mxu0 0.0
      %578 = vmatpush.msra.mxu0 0.0
      %579 = vmatpush.msra.mxu0 0.0
      %580 = vmatpush.msra.mxu0 0.0
      %581 = vmatpush.msra.mxu0 0.0
      %582 = vmatpush.msra.mxu0 0.0
      %583 = vmatpush.msra.mxu0 %v467
      %584 = vmatpush.msra.mxu0 %v448
      %585 = vmatpush.msra.mxu0 %v429
      %586 = vmatpush.msra.mxu0 %v410
      %587 = vmatpush.msra.mxu0 %v389
      %588 = vmatmul.f32.gmra.mxu0 %v503
      %v589 = vpop.f32.mrf.mxu0
      %v590 = vadd.f32 %v484, %v589
      %591 = vmatmul.f32.gmra.mxu0 %v506
      %v592 = vpop.f32.mrf.mxu0
      %v593 = vadd.f32 %v489, %v592
      %594 = vmatmul.f32.gmra.mxu0 %v509
      %v595 = vpop.f32.mrf.mxu0
      %v596 = vadd.f32 %v494, %v595
      %597 = vmatmul.f32.gmra.mxu0 %v512
      %v598 = vpop.f32.mrf.mxu0
      %v599 = vadd.f32 %v499, %v598
      %600 = vdwg.mxu0
      %601 = vmatpush.msra.mxu0 0.0
      %602 = vmatpush.msra.mxu0 0.0
      %603 = vmatpush.msra.mxu0 0.0
      %604 = vmatpush.msra.mxu0 0.0
      %605 = vmatpush.msra.mxu0 0.0
      %606 = vmatpush.msra.mxu0 0.0
      %607 = vmatpush.msra.mxu0 0.0
      %608 = vmatpush.msra.mxu0 0.0
      %609 = vmatpush.msra.mxu0 0.0
      %610 = vmatpush.msra.mxu0 0.0
      %611 = vmatpush.msra.mxu0 0.0
      %612 = vmatpush.msra.mxu0 %v468
      %613 = vmatpush.msra.mxu0 %v449
      %614 = vmatpush.msra.mxu0 %v430
      %615 = vmatpush.msra.mxu0 %v411
      %616 = vmatpush.msra.mxu0 %v390
      %617 = vmatmul.f32.gmra.mxu0 %v503
      %v618 = vpop.f32.mrf.mxu0
      %v619 = vadd.f32 %v484, %v618
      %620 = vmatmul.f32.gmra.mxu0 %v506
      %v621 = vpop.f32.mrf.mxu0
      %v622 = vadd.f32 %v489, %v621
      %623 = vmatmul.f32.gmra.mxu0 %v509
      %v624 = vpop.f32.mrf.mxu0
      %v625 = vadd.f32 %v494, %v624
      %626 = vmatmul.f32.gmra.mxu0 %v512
      %v627 = vpop.f32.mrf.mxu0
      %v628 = vadd.f32 %v499, %v627
      %629 = vdwg.mxu0
      %v630 = vmax.f32 %v532, 0.0
      %v631 = vmax.f32 %v561, 0.0
      %v632 = vmax.f32 %v590, 0.0
      %v633 = vmax.f32 %v619, 0.0
      %v634 = vmax.f32 %v535, 0.0
      %v635 = vmax.f32 %v564, 0.0
      %v636 = vmax.f32 %v593, 0.0
      %v637 = vmax.f32 %v622, 0.0
      %v638 = vmax.f32 %v538, 0.0
      %v639 = vmax.f32 %v567, 0.0
      %v640 = vmax.f32 %v596, 0.0
      %v641 = vmax.f32 %v625, 0.0
      %v642 = vmax.f32 %v541, 0.0
      %v643 = vmax.f32 %v570, 0.0
      %v644 = vmax.f32 %v599, 0.0
      %v645 = vmax.f32 %v628, 0.0
      %v646 = vld [vmem:[%s1] sm:$0xf]
      %v648 = vperm.slane %v646, 0
      %v649 = vperm.slane %v646, 1
      %v650 = vperm.slane %v646, 2
      %v651 = vperm.slane %v646, 3
      %v656 = vmul.f32 %v630, %v648
      %v657 = vmul.f32 %v631, %v649
      %v658 = vmul.f32 %v632, %v650
      %v659 = vmul.f32 %v633, %v651
      %v660 = vmul.f32 %v634, %v648
      %v661 = vmul.f32 %v635, %v649
      %v662 = vmul.f32 %v636, %v650
      %v663 = vmul.f32 %v637, %v651
      %v664 = vmul.f32 %v638, %v648
      %v665 = vmul.f32 %v639, %v649
      %v666 = vmul.f32 %v640, %v650
      %v667 = vmul.f32 %v641, %v651
      %v668 = vmul.f32 %v642, %v648
      %v669 = vmul.f32 %v643, %v649
      %v670 = vmul.f32 %v644, %v650
      %v671 = vmul.f32 %v645, %v651
      %v672 = vld [vmem:[%s5] sm:$0xff]
      %v673 = vld [vmem:[%s5 + $0x8] sm:$0xff]
      %v674 = vld [vmem:[%s6] sm:$0xff]
      %v675 = vld [vmem:[%s6 + $0x8] sm:$0xff]
      %677 = vset.pattern.permute.xlu0 0
      %678 = vperm.xlu0 %677, %v674
      %v679 = vpop.permute.xlu0 %678
      %682 = vset.pattern.permute.xlu0 0
      %683 = vperm.xlu0 %682, %v675
      %v684 = vpop.permute.xlu0 %683
      %vm686 = vcmask 261120
      %v688 = vsel %vm686, %v672, 0
      %v691 = vsel %vm686, %v673, 0
      %693 = vmatpush.msra.mxu0 0.0
      %694 = vmatpush.msra.mxu0 0.0
      %695 = vmatpush.msra.mxu0 0.0
      %696 = vmatpush.msra.mxu0 0.0
      %697 = vmatpush.msra.mxu0 0.0
      %698 = vmatpush.msra.mxu0 0.0
      %699 = vmatpush.msra.mxu0 0.0
      %700 = vmatpush.msra.mxu0 0.0
      %701 = vmatpush.msra.mxu0 0.0
      %702 = vmatpush.msra.mxu0 0.0
      %703 = vmatpush.msra.mxu0 0.0
      %704 = vmatpush.msra.mxu0 0.0
      %705 = vmatpush.msra.mxu0 %v668
      %706 = vmatpush.msra.mxu0 %v664
      %707 = vmatpush.msra.mxu0 %v660
      %708 = vmatpush.msra.mxu0 %v656
      %709 = vmatmul.f32.gmra.mxu0 %v688
      %v710 = vpop.f32.mrf.mxu0
      %v711 = vadd.f32 %v679, %v710
      %712 = vmatmul.f32.gmra.mxu0 %v691
      %v713 = vpop.f32.mrf.mxu0
      %v714 = vadd.f32 %v684, %v713
      %715 = vdwg.mxu0
      %716 = vmatpush.msra.mxu0 0.0
      %717 = vmatpush.msra.mxu0 0.0
      %718 = vmatpush.msra.mxu0 0.0
      %719 = vmatpush.msra.mxu0 0.0
      %720 = vmatpush.msra.mxu0 0.0
      %721 = vmatpush.msra.mxu0 0.0
      %722 = vmatpush.msra.mxu0 0.0
      %723 = vmatpush.msra.mxu0 0.0
      %724 = vmatpush.msra.mxu0 0.0
      %725 = vmatpush.msra.mxu0 0.0
      %726 = vmatpush.msra.mxu0 0.0
      %727 = vmatpush.msra.mxu0 0.0
      %728 = vmatpush.msra.mxu0 %v669
      %729 = vmatpush.msra.mxu0 %v665
      %730 = vmatpush.msra.mxu0 %v661
      %731 = vmatpush.msra.mxu0 %v657
      %732 = vmatmul.f32.gmra.mxu0 %v688
      %v733 = vpop.f32.mrf.mxu0
      %v734 = vadd.f32 %v679, %v733
      %735 = vmatmul.f32.gmra.mxu0 %v691
      %v736 = vpop.f32.mrf.mxu0
      %v737 = vadd.f32 %v684, %v736
      %738 = vdwg.mxu0
      %739 = vmatpush.msra.mxu0 0.0
      %740 = vmatpush.msra.mxu0 0.0
      %741 = vmatpush.msra.mxu0 0.0
      %742 = vmatpush.msra.mxu0 0.0
      %743 = vmatpush.msra.mxu0 0.0
      %744 = vmatpush.msra.mxu0 0.0
      %745 = vmatpush.msra.mxu0 0.0
      %746 = vmatpush.msra.mxu0 0.0
      %747 = vmatpush.msra.mxu0 0.0
      %748 = vmatpush.msra.mxu0 0.0
      %749 = vmatpush.msra.mxu0 0.0
      %750 = vmatpush.msra.mxu0 0.0
      %751 = vmatpush.msra.mxu0 %v670
      %752 = vmatpush.msra.mxu0 %v666
      %753 = vmatpush.msra.mxu0 %v662
      %754 = vmatpush.msra.mxu0 %v658
      %755 = vmatmul.f32.gmra.mxu0 %v688
      %v756 = vpop.f32.mrf.mxu0
      %v757 = vadd.f32 %v679, %v756
      %758 = vmatmul.f32.gmra.mxu0 %v691
      %v759 = vpop.f32.mrf.mxu0
      %v760 = vadd.f32 %v684, %v759
      %761 = vdwg.mxu0
      %762 = vmatpush.msra.mxu0 0.0
      %763 = vmatpush.msra.mxu0 0.0
      %764 = vmatpush.msra.mxu0 0.0
      %765 = vmatpush.msra.mxu0 0.0
      %766 = vmatpush.msra.mxu0 0.0
      %767 = vmatpush.msra.mxu0 0.0
      %768 = vmatpush.msra.mxu0 0.0
      %769 = vmatpush.msra.mxu0 0.0
      %770 = vmatpush.msra.mxu0 0.0
      %771 = vmatpush.msra.mxu0 0.0
      %772 = vmatpush.msra.mxu0 0.0
      %773 = vmatpush.msra.mxu0 0.0
      %774 = vmatpush.msra.mxu0 %v671
      %775 = vmatpush.msra.mxu0 %v667
      %776 = vmatpush.msra.mxu0 %v663
      %777 = vmatpush.msra.mxu0 %v659
      %778 = vmatmul.f32.gmra.mxu0 %v688
      %v779 = vpop.f32.mrf.mxu0
      %v780 = vadd.f32 %v679, %v779
      %781 = vmatmul.f32.gmra.mxu0 %v691
      %v782 = vpop.f32.mrf.mxu0
      %v783 = vadd.f32 %v684, %v782
      %784 = vdwg.mxu0
      %v785 = vmax.f32 %v711, 0.0
      %v786 = vmax.f32 %v734, 0.0
      %v787 = vmax.f32 %v757, 0.0
      %v788 = vmax.f32 %v780, 0.0
      %v789 = vmax.f32 %v714, 0.0
      %v790 = vmax.f32 %v737, 0.0
      %v791 = vmax.f32 %v760, 0.0
      %v792 = vmax.f32 %v783, 0.0
      %801 = vrot.lane.b32.xlu0 %v785, 112
      %v802 = vpop.permute.xlu0 %801
      %803 = vrot.lane.b32.xlu0 %v786, 112
      %v804 = vpop.permute.xlu0 %803
      %805 = vrot.lane.b32.xlu0 %v787, 112
      %v806 = vpop.permute.xlu0 %805
      %807 = vrot.lane.b32.xlu0 %v788, 112
      %v808 = vpop.permute.xlu0 %807
      %809 = vrot.lane.b32.xlu0 %v789, 112
      %v810 = vpop.permute.xlu0 %809
      %811 = vrot.lane.b32.xlu0 %v790, 112
      %v812 = vpop.permute.xlu0 %811
      %813 = vrot.lane.b32.xlu0 %v791, 112
      %v814 = vpop.permute.xlu0 %813
      %815 = vrot.lane.b32.xlu0 %v792, 112
      %v816 = vpop.permute.xlu0 %815
      %v817 = vsel %vm407, %v802, %v804
      %v818 = vsel %vm407, %v804, %v806
      %v819 = vsel %vm407, %v806, %v808
      %v820 = vsel %vm407, %v810, %v812
      %v821 = vsel %vm407, %v812, %v814
      %v822 = vsel %vm407, %v814, %v816
      %829 = vrot.lane.b32.xlu0 %v785, 96
      %v830 = vpop.permute.xlu0 %829
      %831 = vrot.lane.b32.xlu0 %v786, 96
      %v832 = vpop.permute.xlu0 %831
      %833 = vrot.lane.b32.xlu0 %v787, 96
      %v834 = vpop.permute.xlu0 %833
      %835 = vrot.lane.b32.xlu0 %v788, 96
      %v836 = vpop.permute.xlu0 %835
      %837 = vrot.lane.b32.xlu0 %v789, 96
      %v838 = vpop.permute.xlu0 %837
      %839 = vrot.lane.b32.xlu0 %v790, 96
      %v840 = vpop.permute.xlu0 %839
      %841 = vrot.lane.b32.xlu0 %v791, 96
      %v842 = vpop.permute.xlu0 %841
      %843 = vrot.lane.b32.xlu0 %v792, 96
      %v844 = vpop.permute.xlu0 %843
      %v845 = vsel %vm426, %v830, %v832
      %v846 = vsel %vm426, %v832, %v834
      %v847 = vsel %vm426, %v834, %v836
      %v848 = vsel %vm426, %v838, %v840
      %v849 = vsel %vm426, %v840, %v842
      %v850 = vsel %vm426, %v842, %v844
      %857 = vrot.lane.b32.xlu0 %v785, 80
      %v858 = vpop.permute.xlu0 %857
      %859 = vrot.lane.b32.xlu0 %v786, 80
      %v860 = vpop.permute.xlu0 %859
      %861 = vrot.lane.b32.xlu0 %v787, 80
      %v862 = vpop.permute.xlu0 %861
      %863 = vrot.lane.b32.xlu0 %v788, 80
      %v864 = vpop.permute.xlu0 %863
      %865 = vrot.lane.b32.xlu0 %v789, 80
      %v866 = vpop.permute.xlu0 %865
      %867 = vrot.lane.b32.xlu0 %v790, 80
      %v868 = vpop.permute.xlu0 %867
      %869 = vrot.lane.b32.xlu0 %v791, 80
      %v870 = vpop.permute.xlu0 %869
      %871 = vrot.lane.b32.xlu0 %v792, 80
      %v872 = vpop.permute.xlu0 %871
      %v873 = vsel %vm445, %v858, %v860
      %v874 = vsel %vm445, %v860, %v862
      %v875 = vsel %vm445, %v862, %v864
      %v876 = vsel %vm445, %v866, %v868
      %v877 = vsel %vm445, %v868, %v870
      %v878 = vsel %vm445, %v870, %v872
      %885 = vrot.lane.b32.xlu0 %v785, 64
      %v886 = vpop.permute.xlu0 %885
      %887 = vrot.lane.b32.xlu0 %v786, 64
      %v888 = vpop.permute.xlu0 %887
      %889 = vrot.lane.b32.xlu0 %v787, 64
      %v890 = vpop.permute.xlu0 %889
      %891 = vrot.lane.b32.xlu0 %v788, 64
      %v892 = vpop.permute.xlu0 %891
      %893 = vrot.lane.b32.xlu0 %v789, 64
      %v894 = vpop.permute.xlu0 %893
      %895 = vrot.lane.b32.xlu0 %v790, 64
      %v896 = vpop.permute.xlu0 %895
      %897 = vrot.lane.b32.xlu0 %v791, 64
      %v898 = vpop.permute.xlu0 %897
      %899 = vrot.lane.b32.xlu0 %v792, 64
      %v900 = vpop.permute.xlu0 %899
      %v901 = vsel %vm464, %v886, %v888
      %v902 = vsel %vm464, %v888, %v890
      %v903 = vsel %vm464, %v890, %v892
      %v904 = vsel %vm464, %v894, %v896
      %v905 = vsel %vm464, %v896, %v898
      %v906 = vsel %vm464, %v898, %v900
      %v913 = vld [vmem:[%s7] sm:$0xff]
      %v914 = vld [vmem:[%s7 + $0x8] sm:$0xff]
      %v915 = vld [vmem:[%s7 + $0x10] sm:$0xff]
      %v916 = vld [vmem:[%s7 + $0x18] sm:$0xff]
      %v917 = vld [vmem:[%s8] sm:$0xff]
      %v918 = vld [vmem:[%s8 + $0x8] sm:$0xff]
      %v919 = vld [vmem:[%s8 + $0x10] sm:$0xff]
      %v920 = vld [vmem:[%s8 + $0x18] sm:$0xff]
      %922 = vset.pattern.permute.xlu0 0
      %923 = vperm.xlu0 %922, %v917
      %v924 = vpop.permute.xlu0 %923
      %927 = vset.pattern.permute.xlu0 0
      %928 = vperm.xlu0 %927, %v918
      %v929 = vpop.permute.xlu0 %928
      %932 = vset.pattern.permute.xlu0 0
      %933 = vperm.xlu0 %932, %v919
      %v934 = vpop.permute.xlu0 %933
      %937 = vset.pattern.permute.xlu0 0
      %938 = vperm.xlu0 %937, %v920
      %v939 = vpop.permute.xlu0 %938
      %v942 = vsel %vm445, %v913, 0
      %v945 = vsel %vm445, %v914, 0
      %v948 = vsel %vm445, %v915, 0
      %v951 = vsel %vm445, %v916, 0
      %953 = vmatpush.msra.mxu0 0.0
      %954 = vmatpush.msra.mxu0 0.0
      %955 = vmatpush.msra.mxu0 0.0
      %956 = vmatpush.msra.mxu0 0.0
      %957 = vmatpush.msra.mxu0 0.0
      %958 = vmatpush.msra.mxu0 0.0
      %959 = vmatpush.msra.mxu0 %v904
      %960 = vmatpush.msra.mxu0 %v901
      %961 = vmatpush.msra.mxu0 %v876
      %962 = vmatpush.msra.mxu0 %v873
      %963 = vmatpush.msra.mxu0 %v848
      %964 = vmatpush.msra.mxu0 %v845
      %965 = vmatpush.msra.mxu0 %v820
      %966 = vmatpush.msra.mxu0 %v817
      %967 = vmatpush.msra.mxu0 %v789
      %968 = vmatpush.msra.mxu0 %v785
      %969 = vmatmul.f32.gmra.mxu0 %v942
      %v970 = vpop.f32.mrf.mxu0
      %v971 = vadd.f32 %v924, %v970
      %972 = vmatmul.f32.gmra.mxu0 %v945
      %v973 = vpop.f32.mrf.mxu0
      %v974 = vadd.f32 %v929, %v973
      %975 = vmatmul.f32.gmra.mxu0 %v948
      %v976 = vpop.f32.mrf.mxu0
      %v977 = vadd.f32 %v934, %v976
      %978 = vmatmul.f32.gmra.mxu0 %v951
      %v979 = vpop.f32.mrf.mxu0
      %v980 = vadd.f32 %v939, %v979
      %981 = vdwg.mxu0
      %982 = vmatpush.msra.mxu0 0.0
      %983 = vmatpush.msra.mxu0 0.0
      %984 = vmatpush.msra.mxu0 0.0
      %985 = vmatpush.msra.mxu0 0.0
      %986 = vmatpush.msra.mxu0 0.0
      %987 = vmatpush.msra.mxu0 0.0
      %988 = vmatpush.msra.mxu0 %v905
      %989 = vmatpush.msra.mxu0 %v902
      %990 = vmatpush.msra.mxu0 %v877
      %991 = vmatpush.msra.mxu0 %v874
      %992 = vmatpush.msra.mxu0 %v849
      %993 = vmatpush.msra.mxu0 %v846
      %994 = vmatpush.msra.mxu0 %v821
      %995 = vmatpush.msra.mxu0 %v818
      %996 = vmatpush.msra.mxu0 %v790
      %997 = vmatpush.msra.mxu0 %v786
      %998 = vmatmul.f32.gmra.mxu0 %v942
      %v999 = vpop.f32.mrf.mxu0
      %v1000 = vadd.f32 %v924, %v999
      %1001 = vmatmul.f32.gmra.mxu0 %v945
      %v1002 = vpop.f32.mrf.mxu0
      %v1003 = vadd.f32 %v929, %v1002
      %1004 = vmatmul.f32.gmra.mxu0 %v948
      %v1005 = vpop.f32.mrf.mxu0
      %v1006 = vadd.f32 %v934, %v1005
      %1007 = vmatmul.f32.gmra.mxu0 %v951
      %v1008 = vpop.f32.mrf.mxu0
      %v1009 = vadd.f32 %v939, %v1008
      %1010 = vdwg.mxu0
      %1011 = vmatpush.msra.mxu0 0.0
      %1012 = vmatpush.msra.mxu0 0.0
      %1013 = vmatpush.msra.mxu0 0.0
      %1014 = vmatpush.msra.mxu0 0.0
      %1015 = vmatpush.msra.mxu0 0.0
      %1016 = vmatpush.msra.mxu0 0.0
      %1017 = vmatpush.msra.mxu0 %v906
      %1018 = vmatpush.msra.mxu0 %v903
      %1019 = vmatpush.msra.mxu0 %v878
      %1020 = vmatpush.msra.mxu0 %v875
      %1021 = vmatpush.msra.mxu0 %v850
      %1022 = vmatpush.msra.mxu0 %v847
      %1023 = vmatpush.msra.mxu0 %v822
      %1024 = vmatpush.msra.mxu0 %v819
      %1025 = vmatpush.msra.mxu0 %v791
      %1026 = vmatpush.msra.mxu0 %v787
      %1027 = vmatmul.f32.gmra.mxu0 %v942
      %v1028 = vpop.f32.mrf.mxu0
      %v1029 = vadd.f32 %v924, %v1028
      %1030 = vmatmul.f32.gmra.mxu0 %v945
      %v1031 = vpop.f32.mrf.mxu0
      %v1032 = vadd.f32 %v929, %v1031
      %1033 = vmatmul.f32.gmra.mxu0 %v948
      %v1034 = vpop.f32.mrf.mxu0
      %v1035 = vadd.f32 %v934, %v1034
      %1036 = vmatmul.f32.gmra.mxu0 %v951
      %v1037 = vpop.f32.mrf.mxu0
      %v1038 = vadd.f32 %v939, %v1037
      %1039 = vdwg.mxu0
      %v1040 = vmax.f32 %v971, 0.0
      %v1041 = vmax.f32 %v1000, 0.0
      %v1042 = vmax.f32 %v1029, 0.0
      %v1043 = vmax.f32 %v974, 0.0
      %v1044 = vmax.f32 %v1003, 0.0
      %v1045 = vmax.f32 %v1032, 0.0
      %v1046 = vmax.f32 %v977, 0.0
      %v1047 = vmax.f32 %v1006, 0.0
      %v1048 = vmax.f32 %v1035, 0.0
      %v1049 = vmax.f32 %v980, 0.0
      %v1050 = vmax.f32 %v1009, 0.0
      %v1051 = vmax.f32 %v1038, 0.0
      %v1052 = vld [vmem:[%s2] sm:$0x7]
      %v1054 = vperm.slane %v1052, 0
      %v1055 = vperm.slane %v1052, 1
      %v1056 = vperm.slane %v1052, 2
      %v1060 = vmul.f32 %v1040, %v1054
      %v1061 = vmul.f32 %v1041, %v1055
      %v1062 = vmul.f32 %v1042, %v1056
      %v1063 = vmul.f32 %v1043, %v1054
      %v1064 = vmul.f32 %v1044, %v1055
      %v1065 = vmul.f32 %v1045, %v1056
      %v1066 = vmul.f32 %v1046, %v1054
      %v1067 = vmul.f32 %v1047, %v1055
      %v1068 = vmul.f32 %v1048, %v1056
      %v1069 = vmul.f32 %v1049, %v1054
      %v1070 = vmul.f32 %v1050, %v1055
      %v1071 = vmul.f32 %v1051, %v1056
      %v1072 = vld [vmem:[%s9] sm:$0xff]
      %v1073 = vld [vmem:[%s9 + $0x8] sm:$0xff]
      %v1074 = vld [vmem:[%s10] sm:$0xff]
      %v1075 = vld [vmem:[%s10 + $0x8] sm:$0xff]
      %1077 = vset.pattern.permute.xlu0 0
      %1078 = vperm.xlu0 %1077, %v1074
      %v1079 = vpop.permute.xlu0 %1078
      %1082 = vset.pattern.permute.xlu0 0
      %1083 = vperm.xlu0 %1082, %v1075
      %v1084 = vpop.permute.xlu0 %1083
      %v1087 = vsel %vm686, %v1072, 0
      %v1090 = vsel %vm686, %v1073, 0
      %1092 = vmatpush.msra.mxu0 0.0
      %1093 = vmatpush.msra.mxu0 0.0
      %1094 = vmatpush.msra.mxu0 0.0
      %1095 = vmatpush.msra.mxu0 0.0
      %1096 = vmatpush.msra.mxu0 0.0
      %1097 = vmatpush.msra.mxu0 0.0
      %1098 = vmatpush.msra.mxu0 0.0
      %1099 = vmatpush.msra.mxu0 0.0
      %1100 = vmatpush.msra.mxu0 0.0
      %1101 = vmatpush.msra.mxu0 0.0
      %1102 = vmatpush.msra.mxu0 0.0
      %1103 = vmatpush.msra.mxu0 0.0
      %1104 = vmatpush.msra.mxu0 %v1069
      %1105 = vmatpush.msra.mxu0 %v1066
      %1106 = vmatpush.msra.mxu0 %v1063
      %1107 = vmatpush.msra.mxu0 %v1060
      %1108 = vmatmul.f32.gmra.mxu0 %v1087
      %v1109 = vpop.f32.mrf.mxu0
      %v1110 = vadd.f32 %v1079, %v1109
      %1111 = vmatmul.f32.gmra.mxu0 %v1090
      %v1112 = vpop.f32.mrf.mxu0
      %v1113 = vadd.f32 %v1084, %v1112
      %1114 = vdwg.mxu0
      %1115 = vmatpush.msra.mxu0 0.0
      %1116 = vmatpush.msra.mxu0 0.0
      %1117 = vmatpush.msra.mxu0 0.0
      %1118 = vmatpush.msra.mxu0 0.0
      %1119 = vmatpush.msra.mxu0 0.0
      %1120 = vmatpush.msra.mxu0 0.0
      %1121 = vmatpush.msra.mxu0 0.0
      %1122 = vmatpush.msra.mxu0 0.0
      %1123 = vmatpush.msra.mxu0 0.0
      %1124 = vmatpush.msra.mxu0 0.0
      %1125 = vmatpush.msra.mxu0 0.0
      %1126 = vmatpush.msra.mxu0 0.0
      %1127 = vmatpush.msra.mxu0 %v1070
      %1128 = vmatpush.msra.mxu0 %v1067
      %1129 = vmatpush.msra.mxu0 %v1064
      %1130 = vmatpush.msra.mxu0 %v1061
      %1131 = vmatmul.f32.gmra.mxu0 %v1087
      %v1132 = vpop.f32.mrf.mxu0
      %v1133 = vadd.f32 %v1079, %v1132
      %1134 = vmatmul.f32.gmra.mxu0 %v1090
      %v1135 = vpop.f32.mrf.mxu0
      %v1136 = vadd.f32 %v1084, %v1135
      %1137 = vdwg.mxu0
      %1138 = vmatpush.msra.mxu0 0.0
      %1139 = vmatpush.msra.mxu0 0.0
      %1140 = vmatpush.msra.mxu0 0.0
      %1141 = vmatpush.msra.mxu0 0.0
      %1142 = vmatpush.msra.mxu0 0.0
      %1143 = vmatpush.msra.mxu0 0.0
      %1144 = vmatpush.msra.mxu0 0.0
      %1145 = vmatpush.msra.mxu0 0.0
      %1146 = vmatpush.msra.mxu0 0.0
      %1147 = vmatpush.msra.mxu0 0.0
      %1148 = vmatpush.msra.mxu0 0.0
      %1149 = vmatpush.msra.mxu0 0.0
      %1150 = vmatpush.msra.mxu0 %v1071
      %1151 = vmatpush.msra.mxu0 %v1068
      %1152 = vmatpush.msra.mxu0 %v1065
      %1153 = vmatpush.msra.mxu0 %v1062
      %1154 = vmatmul.f32.gmra.mxu0 %v1087
      %v1155 = vpop.f32.mrf.mxu0
      %v1156 = vadd.f32 %v1079, %v1155
      %1157 = vmatmul.f32.gmra.mxu0 %v1090
      %v1158 = vpop.f32.mrf.mxu0
      %v1159 = vadd.f32 %v1084, %v1158
      %1160 = vdwg.mxu0
      %1161 = vst [vmem:[%s386] sm:$0xff] %v1110
      %1162 = vst [vmem:[%s386 + $0x8] sm:$0xff] %v1133
      %1163 = vst [vmem:[%s386 + $0x10] sm:$0xff] %v1156
      %1164 = vst [vmem:[%s386 + $0x18] sm:$0xff] %v1113
      %1165 = vst [vmem:[%s386 + $0x20] sm:$0xff] %v1136
      %1166 = vst [vmem:[%s386 + $0x28] sm:$0xff] %v1159
      %p1167 = scmp.lt.s32.totalorder %s22, 1
      %s1168 = scalar_select %p1167, %s22, 1
      %s1169 = smul.addr %s1168, 6
      %s1170 = smul.addr %s1169, 8
      %s1171 = scalar_lea.vmem %s11, %s1170
      // Predicated region
      $region65: #{mynet_forward.1} parent=63 // pred_check
        %p1172 = pneg %p276
      $region66: #{mynet_forward.1} parent=63 // pred_check_branch
        %1174 = sbr.rel (%p1172) target = $region68
      $region67: #{mynet_forward.1} parent=63 // pred_region
        _
      $region68: #{mynet_forward.1} parent=63 // pred_fallthru
        _
    $region64: #{mynet_forward.1} parent=5 // pred_fallthru
      _
    %p1175 = scmp.le.s32.totalorder 2, %s17
    // Predicated region
    $region69: #{mynet_forward.1} parent=5 // pred_check
      %p1176 = pneg %p1175
    $region70: #{mynet_forward.1} parent=5 // pred_check_branch
      %1178 = sbr.rel (%p1176) target = $region72
    $region71: #{mynet_forward.1} parent=5 // pred_region
      %s1179 = ssub.s32 %s17, 2
      // Predicated region
      $region73: #{mynet_forward.1} parent=71 // pred_check
        %p1180 = pneg %p282
      $region74: #{mynet_forward.1} parent=71 // pred_check_branch
        %1182 = sbr.rel (%p1180) target = $region76
      $region75: #{mynet_forward.1} parent=71 // pred_region
        %p1183 = scmp.lt.s32.totalorder %s23, 1
        %s1184 = scalar_select %p1183, %s23, 1
        %s1185 = smul.addr %s1184, 6
        %s1186 = smul.addr %s1185, 8
        %s1187 = scalar_lea.vmem %s11, %s1186
      $region76: #{mynet_forward.1} parent=71 // pred_fallthru
        _
    $region72: #{mynet_forward.1} parent=5 // pred_fallthru
      _
  $region6: #{mynet_forward.1} parent=0 // loop_footer
    %s21 = sadd.s32 1, %s17
  $region7: #{mynet_forward.1} parent=0 // loop_footer_branch
    %16 = sbr.rel target = $region3
  $region8: #{mynet_forward.1} parent=0 // loop_exit
    _

</llo_original>
